<compile_context>
chip_gen: v7x
topology: tpu7x:2x2x1
jax: 0.10.0
libtpu: 0.0.40
codegen_flags: <defaults>
</compile_context>

<pallas_src>
import jax
import jax.numpy as jnp
from jax.experimental import pallas as pl
from jax.experimental.pallas import tpu as pltpu

NB_CLASSES = 12


def _round_up(n, m):
    return ((n + m - 1) // m) * m


def _pick_tk(d_in, max_tk=2048):
    """Largest K tile that is a multiple of 128 and divides d_in exactly.
    Falls back to one full-extent block when d_in is small or not 128-aligned
    (full-extent block dims are always legal)."""
    if d_in <= max_tk or d_in % 128 != 0:
        return d_in
    best = 128
    for tk in range(128, max_tk + 1, 128):
        if d_in % tk == 0:
            best = tk
    return best


def two_head_kernel(x_ref, wb_ref, bb_ref, w12_ref, b12_ref, out_ref, acc_ref):
    """grid = (batch tiles, K tiles over D_in).

    Backbone matmul accumulates over the K axis into an f32 VMEM scratch;
    bias + ReLU + fused-head matmul + store happen once at the last K step.
    """
    k = pl.program_id(1)

    @pl.when(k == 0)
    def _():
        acc_ref[...] = jnp.zeros_like(acc_ref)

    # In-kernel bf16 cast of x (x streams from HBM as f32 exactly once).
    acc_ref[...] += jnp.dot(x_ref[...].astype(jnp.bfloat16), wb_ref[...],
                            preferred_element_type=jnp.float32)

    @pl.when(k == pl.num_programs(1) - 1)
    def _():
        feats = jnp.maximum(acc_ref[...] + bb_ref[...], 0.0)   # f32 bias + ReLU
        # TODO(synk): training-mode dropout (dropout_p is not None) would go
        # here via pltpu.prng_seed / pltpu.prng_random_bits; eval-only for now.
        out_ref[...] = (jnp.dot(feats.astype(w12_ref.dtype), w12_ref[...],
                                preferred_element_type=jnp.float32)
                        + b12_ref[...]).astype(out_ref.dtype)


def prepare_params(params):
    """One-time weight prep (hoisted out of the per-call hot path):
    fuse the two heads into a lane-dense [W1 || W2] zero-padded to a multiple
    of 128 and cast MXU operands to bf16. Biases stay f32."""
    wb, bb = params["wb"], params["bb"]
    w1, b1 = params["w1"], params["b1"]
    w2, b2 = params["w2"], params["b2"]
    o1, o2 = w1.shape[1], w2.shape[1]
    op = _round_up(o1 + o2, 128)
    pad = op - (o1 + o2)
    w12 = jnp.pad(jnp.concatenate([w1, w2], axis=1), ((0, 0), (0, pad)))
    b12 = jnp.pad(jnp.concatenate([b1, b2], axis=1), ((0, 0), (0, pad)))
    return {
        "wb": wb.astype(jnp.bfloat16),      # [D_in, D_feat] bf16 (MXU)
        "bb": bb.astype(jnp.float32),       # [1, D_feat]    f32
        "w12": w12.astype(jnp.bfloat16),    # [D_feat, OP]   bf16 (MXU)
        "b12": b12.astype(jnp.float32),     # [1, OP]        f32
        "o1": o1,
        "o2": o2,
    }


def two_head_forward(x_nchw, prep):
    """x_nchw: [B, C, H, W] float32. Returns (out1 [B, O1], out2 [B, NB_CLASSES])."""
    B = x_nchw.shape[0]
    x_flat = x_nchw.reshape(B, -1)            # contiguous reshape -> no copy
    D_in = x_flat.shape[1]

    wb, bb = prep["wb"], prep["bb"]
    w12, b12 = prep["w12"], prep["b12"]
    D_feat = wb.shape[1]
    OP = w12.shape[1]
    o1, o2 = prep["o1"], prep["o2"]

    TB = min(256, _round_up(B, 8))            # batch tile (sublane-aligned)
    tk = _pick_tk(D_in)                       # K tile over flattened D_in
    nb = pl.cdiv(B, TB)                       # ragged last batch block is OK
    nk = D_in // tk

    flops = 2 * B * D_in * D_feat + 2 * B * D_feat * OP
    bytes_accessed = (x_flat.size * 4 + wb.size * 2 + w12.size * 2
                      + bb.size * 4 + b12.size * 4 + B * OP * 4)

    # Double-buffered per-step VMEM estimate with headroom; capped below v7x's
    # 64 MiB physical VMEM (safe on v5e/v6e too).
    vmem_est = (2 * (TB * tk * 4 + tk * D_feat * 2
                     + D_feat * OP * 2 + D_feat * 4 + OP * 4)
                + 2 * TB * OP * 4 + TB * D_feat * 4)
    vmem_limit = int(min(max(2 * vmem_est, 16 << 20), 48 << 20))

    out = pl.pallas_call(
        two_head_kernel,
        out_shape=jax.ShapeDtypeStruct((B, OP), jnp.float32),
        grid=(nb, nk),
        in_specs=[
            pl.BlockSpec((TB, tk), lambda i, k: (i, k)),       # x (f32, streamed)
            pl.BlockSpec((tk, D_feat), lambda i, k: (k, 0)),   # backbone weight
            pl.BlockSpec((1, D_feat), lambda i, k: (0, 0)),    # backbone bias
            pl.BlockSpec((D_feat, OP), lambda i, k: (0, 0)),   # fused head weight
            pl.BlockSpec((1, OP), lambda i, k: (0, 0)),        # fused head bias
        ],
        out_specs=pl.BlockSpec((TB, OP), lambda i, k: (i, 0)),
        scratch_shapes=[pltpu.VMEM((TB, D_feat), jnp.float32)],
        compiler_params=pltpu.CompilerParams(
            dimension_semantics=("parallel", "arbitrary"),
            vmem_limit_bytes=vmem_limit),
        cost_estimate=pl.CostEstimate(
            flops=flops, transcendentals=0, bytes_accessed=bytes_accessed),
    )(x_flat, wb, bb, w12, b12)

    # Split the fused lane-dense output back into the two heads (tiny slices).
    return out[:, :o1], out[:, o1:o1 + o2]


def init_params(key, d_in, d_feat, d_out1):
    """Deterministic parameter init (uniform, like nn.Linear default)."""
    ks = jax.random.split(key, 6)

    def linear(kw, kb, fan_in, fan_out):
        bound = 1.0 / jnp.sqrt(fan_in)
        w = jax.random.uniform(kw, (fan_in, fan_out), jnp.float32, -bound, bound)
        b = jax.random.uniform(kb, (1, fan_out), jnp.float32, -bound, bound)
        return w, b

    wb, bb = linear(ks[0], ks[1], d_in, d_feat)        # stand-in backbone
    w1, b1 = linear(ks[2], ks[3], d_feat, d_out1)      # fc1
    w2, b2 = linear(ks[4], ks[5], d_feat, NB_CLASSES)  # fc2
    return {"wb": wb, "bb": bb, "w1": w1, "b1": b1, "w2": w2, "b2": b2}


if __name__ == "__main__":
    key = jax.random.PRNGKey(0)
    kx, kp = jax.random.split(key)

    # Small shapes consistent with the module.
    B, C, H, W = 2, 4, 16, 16
    final_layer_input_dim = 32          # backbone feature dim (fc input)
    final_layer_output_dim = 8          # fc1 output dim

    x = jax.random.normal(kx, (B, C, H, W), jnp.float32)
    params = init_params(kp, C * H * W, final_layer_input_dim,
                         final_layer_output_dim)
    prep = prepare_params(params)       # one-time weight prep (off the hot path)

    out1, out2 = two_head_forward(x, prep)
    jax.block_until_ready((out1, out2))

    # Reference in plain JAX using the same bf16-operand / f32-accumulate recipe.
    x_flat = x.reshape(B, -1)
    feats = jnp.maximum(
        jnp.dot(x_flat.astype(jnp.bfloat16), params["wb"].astype(jnp.bfloat16),
                preferred_element_type=jnp.float32) + params["bb"], 0.0)
    w12 = jnp.concatenate([params["w1"], params["w2"]], axis=1).astype(jnp.bfloat16)
    b12 = jnp.concatenate([params["b1"], params["b2"]], axis=1)
    ref = jnp.dot(feats.astype(jnp.bfloat16), w12,
                  preferred_element_type=jnp.float32) + b12
    ref1 = ref[:, :final_layer_output_dim]
    ref2 = ref[:, final_layer_output_dim:final_layer_output_dim + NB_CLASSES]

    assert out1.shape == (B, final_layer_output_dim)
    assert out2.shape == (B, NB_CLASSES)
    assert jnp.allclose(out1, ref1, atol=2e-3, rtol=2e-3)
    assert jnp.allclose(out2, ref2, atol=2e-3, rtol=2e-3)

    print("KERNEL_OK")
</pallas_src>

<mosaic_0001>
module attributes {stable_mosaic.version = 11 : i64} {
  func.func @two_head_kernel(%arg0: i32, %arg1: i32, %arg2: memref<8x1024xf32, #tpu.memory_space<vmem>>, %arg3: memref<1024x32xbf16, #tpu.memory_space<vmem>>, %arg4: memref<1x32xf32, #tpu.memory_space<vmem>>, %arg5: memref<32x128xbf16, #tpu.memory_space<vmem>>, %arg6: memref<1x128xf32, #tpu.memory_space<vmem>>, %arg7: memref<8x128xf32, #tpu.memory_space<vmem>>, %arg8: memref<8x32xf32, #tpu.memory_space<vmem>>) attributes {dimension_semantics = [#tpu.dimension_semantics<parallel>, #tpu.dimension_semantics<arbitrary>], iteration_bounds = array<i64: 1, 1>, scalar_prefetch = 0 : i64, scratch_operands = 1 : i64, tpu.core_type = #tpu.core_type<tc>, window_params = [{transform_indices = @transform_0, window_bounds = array<i64: 8, 1024>}, {transform_indices = @transform_1, window_bounds = array<i64: 1024, 32>}, {pipeline_mode = #tpu.pipeline_mode<synchronous>, transform_indices = @transform_2, window_bounds = array<i64: 1, 32>}, {pipeline_mode = #tpu.pipeline_mode<synchronous>, transform_indices = @transform_3, window_bounds = array<i64: 32, 128>}, {pipeline_mode = #tpu.pipeline_mode<synchronous>, transform_indices = @transform_4, window_bounds = array<i64: 1, 128>}, {transform_indices = @transform_5, window_bounds = array<i64: 8, 128>}]} {
    %c0_i32 = arith.constant 0 : i32
    %0 = arith.cmpi eq, %arg1, %c0_i32 : i32
    %1 = arith.extui %0 : i1 to i32
    %c0_i32_0 = arith.constant 0 : i32
    %2 = arith.cmpi ne, %1, %c0_i32_0 : i32
    scf.if %2 {
      %cst_10 = arith.constant 0.000000e+00 : f32
      %13 = vector.broadcast %cst_10 : f32 to vector<8x32xf32>
      %c0_11 = arith.constant 0 : index
      %c0_12 = arith.constant 0 : index
      %14 = vector.load %arg8[%c0_11, %c0_12] : memref<8x32xf32, #tpu.memory_space<vmem>>, vector<8x32xf32>
      tpu.vector_store %arg8[%c0_11, %c0_12], %13 {strides = array<i32>} : memref<8x32xf32, #tpu.memory_space<vmem>>, vector<8x32xf32>,
    } else {
    }
    %c0 = arith.constant 0 : index
    %c0_1 = arith.constant 0 : index
    %3 = vector.load %arg8[%c0, %c0_1] : memref<8x32xf32, #tpu.memory_space<vmem>>, vector<8x32xf32>
    %c0_2 = arith.constant 0 : index
    %c0_3 = arith.constant 0 : index
    %4 = vector.load %arg2[%c0_2, %c0_3] : memref<8x1024xf32, #tpu.memory_space<vmem>>, vector<8x1024xf32>
    %5 = arith.truncf %4 : vector<8x1024xf32> to vector<8x1024xbf16>
    %c0_4 = arith.constant 0 : index
    %c0_5 = arith.constant 0 : index
    %6 = vector.load %arg3[%c0_4, %c0_5] : memref<1024x32xbf16, #tpu.memory_space<vmem>>, vector<1024x32xbf16>
    %cst = arith.constant dense<0.000000e+00> : vector<8x32xf32>
    %7 = tpu.matmul %5, %6, %cst {dimension_numbers = #tpu.dot_dimension_numbers<[1], [0], [0], [1], [0, 0, 1, 1], [], []>} : vector<8x1024xbf16>, vector<1024x32xbf16>, vector<8x32xf32> -> vector<8x32xf32>
    %8 = arith.addf %3, %7 : vector<8x32xf32>
    %c0_6 = arith.constant 0 : index
    %c0_7 = arith.constant 0 : index
    %9 = vector.load %arg8[%c0_6, %c0_7] : memref<8x32xf32, #tpu.memory_space<vmem>>, vector<8x32xf32>
    tpu.vector_store %arg8[%c0_6, %c0_7], %8 {strides = array<i32>} : memref<8x32xf32, #tpu.memory_space<vmem>>, vector<8x32xf32>,
    %c0_i32_8 = arith.constant 0 : i32
    %10 = arith.cmpi eq, %arg1, %c0_i32_8 : i32
    %11 = arith.extui %10 : i1 to i32
    %c0_i32_9 = arith.constant 0 : i32
    %12 = arith.cmpi ne, %11, %c0_i32_9 : i32
    scf.if %12 {
      %c0_10 = arith.constant 0 : index
      %c0_11 = arith.constant 0 : index
      %13 = vector.load %arg8[%c0_10, %c0_11] : memref<8x32xf32, #tpu.memory_space<vmem>>, vector<8x32xf32>
      %c0_12 = arith.constant 0 : index
      %c0_13 = arith.constant 0 : index
      %14 = vector.load %arg4[%c0_12, %c0_13] : memref<1x32xf32, #tpu.memory_space<vmem>>, vector<1x32xf32>
      %15 = vector.broadcast %14 : vector<1x32xf32> to vector<8x32xf32>
      %16 = arith.addf %13, %15 : vector<8x32xf32>
      %cst_14 = arith.constant 0.000000e+00 : f32
      %17 = vector.broadcast %cst_14 : f32 to vector<8x32xf32>
      %18 = arith.maximumf %16, %17 : vector<8x32xf32>
      %19 = arith.truncf %18 : vector<8x32xf32> to vector<8x32xbf16>
      %c0_15 = arith.constant 0 : index
      %c0_16 = arith.constant 0 : index
      %20 = vector.load %arg5[%c0_15, %c0_16] : memref<32x128xbf16, #tpu.memory_space<vmem>>, vector<32x128xbf16>
      %cst_17 = arith.constant dense<0.000000e+00> : vector<8x128xf32>
      %21 = tpu.matmul %19, %20, %cst_17 {dimension_numbers = #tpu.dot_dimension_numbers<[1], [0], [0], [1], [0, 0, 1, 1], [], []>} : vector<8x32xbf16>, vector<32x128xbf16>, vector<8x128xf32> -> vector<8x128xf32>
      %c0_18 = arith.constant 0 : index
      %c0_19 = arith.constant 0 : index
      %22 = vector.load %arg6[%c0_18, %c0_19] : memref<1x128xf32, #tpu.memory_space<vmem>>, vector<1x128xf32>
      %23 = vector.broadcast %22 : vector<1x128xf32> to vector<8x128xf32>
      %24 = arith.addf %21, %23 : vector<8x128xf32>
      %c0_20 = arith.constant 0 : index
      %c0_21 = arith.constant 0 : index
      %25 = vector.load %arg7[%c0_20, %c0_21] : memref<8x128xf32, #tpu.memory_space<vmem>>, vector<8x128xf32>
      tpu.vector_store %arg7[%c0_20, %c0_21], %24 {strides = array<i32>} : memref<8x128xf32, #tpu.memory_space<vmem>>, vector<8x128xf32>,
    } else {
    }
    return
  }
  func.func @transform_0(%arg0: i32, %arg1: i32) -> (i32, i32) {
    %c0_i32 = arith.constant 0 : i32
    return %arg0, %arg1 : i32, i32
  }
  func.func @transform_1(%arg0: i32, %arg1: i32) -> (i32, i32) {
    %c0_i32 = arith.constant 0 : i32
    %c0_i32_0 = arith.constant 0 : i32
    return %arg1, %c0_i32 : i32, i32
  }
  func.func @transform_2(%arg0: i32, %arg1: i32) -> (i32, i32) {
    %c0_i32 = arith.constant 0 : i32
    %c0_i32_0 = arith.constant 0 : i32
    %c0_i32_1 = arith.constant 0 : i32
    return %c0_i32, %c0_i32_0 : i32, i32
  }
  func.func @transform_3(%arg0: i32, %arg1: i32) -> (i32, i32) {
    %c0_i32 = arith.constant 0 : i32
    %c0_i32_0 = arith.constant 0 : i32
    %c0_i32_1 = arith.constant 0 : i32
    return %c0_i32, %c0_i32_0 : i32, i32
  }
  func.func @transform_4(%arg0: i32, %arg1: i32) -> (i32, i32) {
    %c0_i32 = arith.constant 0 : i32
    %c0_i32_0 = arith.constant 0 : i32
    %c0_i32_1 = arith.constant 0 : i32
    return %c0_i32, %c0_i32_0 : i32, i32
  }
  func.func @transform_5(%arg0: i32, %arg1: i32) -> (i32, i32) {
    %c0_i32 = arith.constant 0 : i32
    %c0_i32_0 = arith.constant 0 : i32
    return %arg0, %c0_i32 : i32, i32
  }
}

</mosaic_0001>

<llo_original>
// kernel: tpu_custom_call.1
$region0: #{tpu_custom_call.1}
  #allocation0 [shape = 'u32[]', space=smem, size = 0x4, offset = 0x4, fixed_abs, tag = 'smem constant byte address 0x4 - core index']
  #allocation1 [shape = 'u32[144,128]{1,0:T(1,128)}', space=vmem, size = 0x12000, scoped, tag = 'internal scratch']
  #allocation2 [shape = 'f32[8,32]{1,0:T(8,128)}', space=vmem, size = 0x1000, scoped, tag = 'scratch operand']
  %s0 = inlined_call_operand.vmem [shape: f32[2,1024], index: 0, kind: input, shape index: {}]
  %s1 = inlined_call_operand.vmem [shape: bf16[1024,32], index: 1, kind: input, shape index: {}]
  %s2 = inlined_call_operand.vmem [shape: f32[1,32], index: 2, kind: input, shape index: {}]
  %s3 = inlined_call_operand.vmem [shape: bf16[32,128], index: 3, kind: input, shape index: {}]
  %s4 = inlined_call_operand.vmem [shape: f32[1,128], index: 4, kind: input, shape index: {}]
  %s5 = inlined_call_operand.hbm [shape: f32[2,128], index: 5, kind: output, shape index: {}]
  %s6 = sld [smem:[#allocation0]]
  $region38: #{tpu_custom_call.1} parent=0
    _
  %s8 = ssub.s32 1, %s6
  %s9 = scalar_select 0, %s8, %s6
  $region1: #{tpu_custom_call.1} parent=0
    #allocation3 [shape = 'u8[4096]{0}', space=vmem, size = 0x1000, scoped, tag = 'output window, operand 0, single buffered']
    #allocation4 [shape = 's32[1]{0}', space=sflag, size = 0x4, scoped, tag = 'scoped memory for tpu_custom_call.1']
    %10 = vsyncpa [#allocation4], 0
    // Predicated region
    $region2: #{tpu_custom_call.1} parent=1 // pred_check
      _
    $region3: #{tpu_custom_call.1} parent=1 // pred_check_branch
      %12 = sbr.rel (0) target = $region5
    $region4: #{tpu_custom_call.1} parent=1 // pred_region
      _
    $region5: #{tpu_custom_call.1} parent=1 // pred_fallthru
      _
    // Predicated region
    $region6: #{tpu_custom_call.1} parent=1 // pred_check
      _
    $region7: #{tpu_custom_call.1} parent=1 // pred_check_branch
      %14 = sbr.rel (0) target = $region9
    $region8: #{tpu_custom_call.1} parent=1 // pred_region
      _
    $region9: #{tpu_custom_call.1} parent=1 // pred_fallthru
      _
    // Predicated region
    $region10: #{tpu_custom_call.1} parent=1 // pred_check
      _
    $region11: #{tpu_custom_call.1} parent=1 // pred_check_branch
      %16 = sbr.rel (0) target = $region13
    $region12: #{tpu_custom_call.1} parent=1 // pred_region
      _
    $region13: #{tpu_custom_call.1} parent=1 // pred_fallthru
      _
    // Predicated region
    $region14: #{tpu_custom_call.1} parent=1 // pred_check
      _
    $region15: #{tpu_custom_call.1} parent=1 // pred_check_branch
      %18 = sbr.rel (0) target = $region17
    $region16: #{tpu_custom_call.1} parent=1 // pred_region
      _
    $region17: #{tpu_custom_call.1} parent=1 // pred_fallthru
      _
    // Predicated region
    $region18: #{tpu_custom_call.1} parent=1 // pred_check
      _
    $region19: #{tpu_custom_call.1} parent=1 // pred_check_branch
      %20 = sbr.rel (0) target = $region21
    $region20: #{tpu_custom_call.1} parent=1 // pred_region
      _
    $region21: #{tpu_custom_call.1} parent=1 // pred_fallthru
      _
    %p22 = scmp.eq.s32.totalorder 0, 0
    // Predicated region
    $region22: #{tpu_custom_call.1} parent=1 // pred_check
      %p23 = pneg %p22
    $region23: #{tpu_custom_call.1} parent=1 // pred_check_branch
      %25 = sbr.rel (%p23) target = $region25
    $region24: #{tpu_custom_call.1} parent=1 // pred_region
      %vm26 = vcmask 261120
      %27 = vst.msk [vmem:[#allocation2] sm:$0xff] %vm26, 0.0
    $region25: #{tpu_custom_call.1} parent=1 // pred_fallthru
      _
    %v28 = vld [vmem:[#allocation2] sm:$0xff]
    %v29 = vld [vmem:[%s0] sm:$0xff]
    %v30 = vld [vmem:[%s0 + $0x8] sm:$0xff]
    %v31 = vld [vmem:[%s0 + $0x10] sm:$0xff]
    %v32 = vld [vmem:[%s0 + $0x18] sm:$0xff]
    %v33 = vld [vmem:[%s0 + $0x20] sm:$0xff]
    %v34 = vld [vmem:[%s0 + $0x28] sm:$0xff]
    %v35 = vld [vmem:[%s0 + $0x30] sm:$0xff]
    %v36 = vld [vmem:[%s0 + $0x38] sm:$0xff]
    %v45 = vcombine.low %v29, %v31
    %v46 = vcombine.high %v29, %v31
    %v47 = vcombine.low %v33, %v35
    %v48 = vcombine.high %v33, %v35
    %v50 = vunpack.c.l.s4 1983009808
    %v51 = vunpack.c.0.s8 %v50
    %v52 = vlaneseq
    %v53 = vshrl.u32 %v52, 7
    %v54 = vsub.s32 %v51, %v53
    %v55 = vrot.slane %v45, %v54
    %v57 = vunpack.c.l.s4 1983009808
    %v58 = vunpack.c.0.s8 %v57
    %v59 = vlaneseq
    %v60 = vshrl.u32 %v59, 7
    %v61 = vsub.s32 %v58, %v60
    %v62 = vrot.slane %v46, %v61
    %v64 = vunpack.c.l.s4 1983009808
    %v65 = vunpack.c.0.s8 %v64
    %v66 = vlaneseq
    %v67 = vshrl.u32 %v66, 7
    %v68 = vsub.s32 %v65, %v67
    %v69 = vrot.slane %v47, %v68
    %v71 = vunpack.c.l.s4 1983009808
    %v72 = vunpack.c.0.s8 %v71
    %v73 = vlaneseq
    %v74 = vshrl.u32 %v73, 7
    %v75 = vsub.s32 %v72, %v74
    %v76 = vrot.slane %v48, %v75
    %v77 = vcombine.low %v55, %v69
    %v78 = vcombine.high %v55, %v69
    %v79 = vcombine.low %v62, %v76
    %v80 = vcombine.high %v62, %v76
    %v81 = vcombine.low %v30, %v32
    %v82 = vcombine.high %v30, %v32
    %v83 = vcombine.low %v34, %v36
    %v84 = vcombine.high %v34, %v36
    %v86 = vunpack.c.l.s4 1983009808
    %v87 = vunpack.c.0.s8 %v86
    %v88 = vlaneseq
    %v89 = vshrl.u32 %v88, 7
    %v90 = vsub.s32 %v87, %v89
    %v91 = vrot.slane %v81, %v90
    %v93 = vunpack.c.l.s4 1983009808
    %v94 = vunpack.c.0.s8 %v93
    %v95 = vlaneseq
    %v96 = vshrl.u32 %v95, 7
    %v97 = vsub.s32 %v94, %v96
    %v98 = vrot.slane %v82, %v97
    %v100 = vunpack.c.l.s4 1983009808
    %v101 = vunpack.c.0.s8 %v100
    %v102 = vlaneseq
    %v103 = vshrl.u32 %v102, 7
    %v104 = vsub.s32 %v101, %v103
    %v105 = vrot.slane %v83, %v104
    %v107 = vunpack.c.l.s4 1983009808
    %v108 = vunpack.c.0.s8 %v107
    %v109 = vlaneseq
    %v110 = vshrl.u32 %v109, 7
    %v111 = vsub.s32 %v108, %v110
    %v112 = vrot.slane %v84, %v111
    %v113 = vcombine.low %v91, %v105
    %v114 = vcombine.high %v91, %v105
    %v115 = vcombine.low %v98, %v112
    %v116 = vcombine.high %v98, %v112
    %v125 = vpack.c.bf16 %v77, %v77
    %v126 = vpack.c.bf16 %v78, %v78
    %v127 = vpack.c.bf16 %v79, %v79
    %v128 = vpack.c.bf16 %v80, %v80
    %v129 = vpack.c.bf16 %v113, %v113
    %v130 = vpack.c.bf16 %v114, %v114
    %v131 = vpack.c.bf16 %v115, %v115
    %v132 = vpack.c.bf16 %v116, %v116
    %v133 = vld [vmem:[%s1] sm:$0xf]
    %v134 = vld [vmem:[%s1 + $0x4] sm:$0xf]
    %v135 = vld [vmem:[%s1 + $0x8] sm:$0xf]
    %v136 = vld [vmem:[%s1 + $0xc] sm:$0xf]
    %v137 = vld [vmem:[%s1 + $0x10] sm:$0xf]
    %v138 = vld [vmem:[%s1 + $0x14] sm:$0xf]
    %v139 = vld [vmem:[%s1 + $0x18] sm:$0xf]
    %v140 = vld [vmem:[%s1 + $0x1c] sm:$0xf]
    %v141 = vld [vmem:[%s1 + $0x20] sm:$0xf]
    %v142 = vld [vmem:[%s1 + $0x24] sm:$0xf]
    %v143 = vld [vmem:[%s1 + $0x28] sm:$0xf]
    %v144 = vld [vmem:[%s1 + $0x2c] sm:$0xf]
    %v145 = vld [vmem:[%s1 + $0x30] sm:$0xf]
    %v146 = vld [vmem:[%s1 + $0x34] sm:$0xf]
    %v147 = vld [vmem:[%s1 + $0x38] sm:$0xf]
    %v148 = vld [vmem:[%s1 + $0x3c] sm:$0xf]
    %v149 = vld [vmem:[%s1 + $0x40] sm:$0xf]
    %v150 = vld [vmem:[%s1 + $0x44] sm:$0xf]
    %v151 = vld [vmem:[%s1 + $0x48] sm:$0xf]
    %v152 = vld [vmem:[%s1 + $0x4c] sm:$0xf]
    %v153 = vld [vmem:[%s1 + $0x50] sm:$0xf]
    %v154 = vld [vmem:[%s1 + $0x54] sm:$0xf]
    %v155 = vld [vmem:[%s1 + $0x58] sm:$0xf]
    %v156 = vld [vmem:[%s1 + $0x5c] sm:$0xf]
    %v157 = vld [vmem:[%s1 + $0x60] sm:$0xf]
    %v158 = vld [vmem:[%s1 + $0x64] sm:$0xf]
    %v159 = vld [vmem:[%s1 + $0x68] sm:$0xf]
    %v160 = vld [vmem:[%s1 + $0x6c] sm:$0xf]
    %v161 = vld [vmem:[%s1 + $0x70] sm:$0xf]
    %v162 = vld [vmem:[%s1 + $0x74] sm:$0xf]
    %v163 = vld [vmem:[%s1 + $0x78] sm:$0xf]
    %v164 = vld [vmem:[%s1 + $0x7c] sm:$0xf]
    %v165 = vld [vmem:[%s1 + $0x80] sm:$0xf]
    %v166 = vld [vmem:[%s1 + $0x84] sm:$0xf]
    %v167 = vld [vmem:[%s1 + $0x88] sm:$0xf]
    %v168 = vld [vmem:[%s1 + $0x8c] sm:$0xf]
    %v169 = vld [vmem:[%s1 + $0x90] sm:$0xf]
    %v170 = vld [vmem:[%s1 + $0x94] sm:$0xf]
    %v171 = vld [vmem:[%s1 + $0x98] sm:$0xf]
    %v172 = vld [vmem:[%s1 + $0x9c] sm:$0xf]
    %v173 = vld [vmem:[%s1 + $0xa0] sm:$0xf]
    %v174 = vld [vmem:[%s1 + $0xa4] sm:$0xf]
    %v175 = vld [vmem:[%s1 + $0xa8] sm:$0xf]
    %v176 = vld [vmem:[%s1 + $0xac] sm:$0xf]
    %v177 = vld [vmem:[%s1 + $0xb0] sm:$0xf]
    %v178 = vld [vmem:[%s1 + $0xb4] sm:$0xf]
    %v179 = vld [vmem:[%s1 + $0xb8] sm:$0xf]
    %v180 = vld [vmem:[%s1 + $0xbc] sm:$0xf]
    %v181 = vld [vmem:[%s1 + $0xc0] sm:$0xf]
    %v182 = vld [vmem:[%s1 + $0xc4] sm:$0xf]
    %v183 = vld [vmem:[%s1 + $0xc8] sm:$0xf]
    %v184 = vld [vmem:[%s1 + $0xcc] sm:$0xf]
    %v185 = vld [vmem:[%s1 + $0xd0] sm:$0xf]
    %v186 = vld [vmem:[%s1 + $0xd4] sm:$0xf]
    %v187 = vld [vmem:[%s1 + $0xd8] sm:$0xf]
    %v188 = vld [vmem:[%s1 + $0xdc] sm:$0xf]
    %v189 = vld [vmem:[%s1 + $0xe0] sm:$0xf]
    %v190 = vld [vmem:[%s1 + $0xe4] sm:$0xf]
    %v191 = vld [vmem:[%s1 + $0xe8] sm:$0xf]
    %v192 = vld [vmem:[%s1 + $0xec] sm:$0xf]
    %v193 = vld [vmem:[%s1 + $0xf0] sm:$0xf]
    %v194 = vld [vmem:[%s1 + $0xf4] sm:$0xf]
    %v195 = vld [vmem:[%s1 + $0xf8] sm:$0xf]
    %v196 = vld [vmem:[%s1 + $0xfc] sm:$0xf]
    %v197 = vld [vmem:[%s1 + $0x100] sm:$0xf]
    %v198 = vld [vmem:[%s1 + $0x104] sm:$0xf]
    %v199 = vld [vmem:[%s1 + $0x108] sm:$0xf]
    %v200 = vld [vmem:[%s1 + $0x10c] sm:$0xf]
    %v201 = vld [vmem:[%s1 + $0x110] sm:$0xf]
    %v202 = vld [vmem:[%s1 + $0x114] sm:$0xf]
    %v203 = vld [vmem:[%s1 + $0x118] sm:$0xf]
    %v204 = vld [vmem:[%s1 + $0x11c] sm:$0xf]
    %v205 = vld [vmem:[%s1 + $0x120] sm:$0xf]
    %v206 = vld [vmem:[%s1 + $0x124] sm:$0xf]
    %v207 = vld [vmem:[%s1 + $0x128] sm:$0xf]
    %v208 = vld [vmem:[%s1 + $0x12c] sm:$0xf]
    %v209 = vld [vmem:[%s1 + $0x130] sm:$0xf]
    %v210 = vld [vmem:[%s1 + $0x134] sm:$0xf]
    %v211 = vld [vmem:[%s1 + $0x138] sm:$0xf]
    %v212 = vld [vmem:[%s1 + $0x13c] sm:$0xf]
    %v213 = vld [vmem:[%s1 + $0x140] sm:$0xf]
    %v214 = vld [vmem:[%s1 + $0x144] sm:$0xf]
    %v215 = vld [vmem:[%s1 + $0x148] sm:$0xf]
    %v216 = vld [vmem:[%s1 + $0x14c] sm:$0xf]
    %v217 = vld [vmem:[%s1 + $0x150] sm:$0xf]
    %v218 = vld [vmem:[%s1 + $0x154] sm:$0xf]
    %v219 = vld [vmem:[%s1 + $0x158] sm:$0xf]
    %v220 = vld [vmem:[%s1 + $0x15c] sm:$0xf]
    %v221 = vld [vmem:[%s1 + $0x160] sm:$0xf]
    %v222 = vld [vmem:[%s1 + $0x164] sm:$0xf]
    %v223 = vld [vmem:[%s1 + $0x168] sm:$0xf]
    %v224 = vld [vmem:[%s1 + $0x16c] sm:$0xf]
    %v225 = vld [vmem:[%s1 + $0x170] sm:$0xf]
    %v226 = vld [vmem:[%s1 + $0x174] sm:$0xf]
    %v227 = vld [vmem:[%s1 + $0x178] sm:$0xf]
    %v228 = vld [vmem:[%s1 + $0x17c] sm:$0xf]
    %v229 = vld [vmem:[%s1 + $0x180] sm:$0xf]
    %v230 = vld [vmem:[%s1 + $0x184] sm:$0xf]
    %v231 = vld [vmem:[%s1 + $0x188] sm:$0xf]
    %v232 = vld [vmem:[%s1 + $0x18c] sm:$0xf]
    %v233 = vld [vmem:[%s1 + $0x190] sm:$0xf]
    %v234 = vld [vmem:[%s1 + $0x194] sm:$0xf]
    %v235 = vld [vmem:[%s1 + $0x198] sm:$0xf]
    %v236 = vld [vmem:[%s1 + $0x19c] sm:$0xf]
    %v237 = vld [vmem:[%s1 + $0x1a0] sm:$0xf]
    %v238 = vld [vmem:[%s1 + $0x1a4] sm:$0xf]
    %v239 = vld [vmem:[%s1 + $0x1a8] sm:$0xf]
    %v240 = vld [vmem:[%s1 + $0x1ac] sm:$0xf]
    %v241 = vld [vmem:[%s1 + $0x1b0] sm:$0xf]
    %v242 = vld [vmem:[%s1 + $0x1b4] sm:$0xf]
    %v243 = vld [vmem:[%s1 + $0x1b8] sm:$0xf]
    %v244 = vld [vmem:[%s1 + $0x1bc] sm:$0xf]
    %v245 = vld [vmem:[%s1 + $0x1c0] sm:$0xf]
    %v246 = vld [vmem:[%s1 + $0x1c4] sm:$0xf]
    %v247 = vld [vmem:[%s1 + $0x1c8] sm:$0xf]
    %v248 = vld [vmem:[%s1 + $0x1cc] sm:$0xf]
    %v249 = vld [vmem:[%s1 + $0x1d0] sm:$0xf]
    %v250 = vld [vmem:[%s1 + $0x1d4] sm:$0xf]
    %v251 = vld [vmem:[%s1 + $0x1d8] sm:$0xf]
    %v252 = vld [vmem:[%s1 + $0x1dc] sm:$0xf]
    %v253 = vld [vmem:[%s1 + $0x1e0] sm:$0xf]
    %v254 = vld [vmem:[%s1 + $0x1e4] sm:$0xf]
    %v255 = vld [vmem:[%s1 + $0x1e8] sm:$0xf]
    %v256 = vld [vmem:[%s1 + $0x1ec] sm:$0xf]
    %v257 = vld [vmem:[%s1 + $0x1f0] sm:$0xf]
    %v258 = vld [vmem:[%s1 + $0x1f4] sm:$0xf]
    %v259 = vld [vmem:[%s1 + $0x1f8] sm:$0xf]
    %v260 = vld [vmem:[%s1 + $0x1fc] sm:$0xf]
    %v389 = vunpack.c.l.b16 %v133
    %v390 = vunpack.c.l.b16 %v134
    %v391 = vunpack.c.l.b16 %v135
    %v392 = vunpack.c.l.b16 %v136
    %v393 = vunpack.c.l.b16 %v137
    %v394 = vunpack.c.l.b16 %v138
    %v395 = vunpack.c.l.b16 %v139
    %v396 = vunpack.c.l.b16 %v140
    %v397 = vunpack.c.l.b16 %v141
    %v398 = vunpack.c.l.b16 %v142
    %v399 = vunpack.c.l.b16 %v143
    %v400 = vunpack.c.l.b16 %v144
    %v401 = vunpack.c.l.b16 %v145
    %v402 = vunpack.c.l.b16 %v146
    %v403 = vunpack.c.l.b16 %v147
    %v404 = vunpack.c.l.b16 %v148
    %v405 = vunpack.c.l.b16 %v149
    %v406 = vunpack.c.l.b16 %v150
    %v407 = vunpack.c.l.b16 %v151
    %v408 = vunpack.c.l.b16 %v152
    %v409 = vunpack.c.l.b16 %v153
    %v410 = vunpack.c.l.b16 %v154
    %v411 = vunpack.c.l.b16 %v155
    %v412 = vunpack.c.l.b16 %v156
    %v413 = vunpack.c.l.b16 %v157
    %v414 = vunpack.c.l.b16 %v158
    %v415 = vunpack.c.l.b16 %v159
    %v416 = vunpack.c.l.b16 %v160
    %v417 = vunpack.c.l.b16 %v161
    %v418 = vunpack.c.l.b16 %v162
    %v419 = vunpack.c.l.b16 %v163
    %v420 = vunpack.c.l.b16 %v164
    %v421 = vunpack.c.l.b16 %v165
    %v422 = vunpack.c.l.b16 %v166
    %v423 = vunpack.c.l.b16 %v167
    %v424 = vunpack.c.l.b16 %v168
    %v425 = vunpack.c.l.b16 %v169
    %v426 = vunpack.c.l.b16 %v170
    %v427 = vunpack.c.l.b16 %v171
    %v428 = vunpack.c.l.b16 %v172
    %v429 = vunpack.c.l.b16 %v173
    %v430 = vunpack.c.l.b16 %v174
    %v431 = vunpack.c.l.b16 %v175
    %v432 = vunpack.c.l.b16 %v176
    %v433 = vunpack.c.l.b16 %v177
    %v434 = vunpack.c.l.b16 %v178
    %v435 = vunpack.c.l.b16 %v179
    %v436 = vunpack.c.l.b16 %v180
    %v437 = vunpack.c.l.b16 %v181
    %v438 = vunpack.c.l.b16 %v182
    %v439 = vunpack.c.l.b16 %v183
    %v440 = vunpack.c.l.b16 %v184
    %v441 = vunpack.c.l.b16 %v185
    %v442 = vunpack.c.l.b16 %v186
    %v443 = vunpack.c.l.b16 %v187
    %v444 = vunpack.c.l.b16 %v188
    %v445 = vunpack.c.l.b16 %v189
    %v446 = vunpack.c.l.b16 %v190
    %v447 = vunpack.c.l.b16 %v191
    %v448 = vunpack.c.l.b16 %v192
    %v449 = vunpack.c.l.b16 %v193
    %v450 = vunpack.c.l.b16 %v194
    %v451 = vunpack.c.l.b16 %v195
    %v452 = vunpack.c.l.b16 %v196
    %v453 = vunpack.c.l.b16 %v197
    %v454 = vunpack.c.l.b16 %v198
    %v455 = vunpack.c.l.b16 %v199
    %v456 = vunpack.c.l.b16 %v200
    %v457 = vunpack.c.l.b16 %v201
    %v458 = vunpack.c.l.b16 %v202
    %v459 = vunpack.c.l.b16 %v203
    %v460 = vunpack.c.l.b16 %v204
    %v461 = vunpack.c.l.b16 %v205
    %v462 = vunpack.c.l.b16 %v206
    %v463 = vunpack.c.l.b16 %v207
    %v464 = vunpack.c.l.b16 %v208
    %v465 = vunpack.c.l.b16 %v209
    %v466 = vunpack.c.l.b16 %v210
    %v467 = vunpack.c.l.b16 %v211
    %v468 = vunpack.c.l.b16 %v212
    %v469 = vunpack.c.l.b16 %v213
    %v470 = vunpack.c.l.b16 %v214
    %v471 = vunpack.c.l.b16 %v215
    %v472 = vunpack.c.l.b16 %v216
    %v473 = vunpack.c.l.b16 %v217
    %v474 = vunpack.c.l.b16 %v218
    %v475 = vunpack.c.l.b16 %v219
    %v476 = vunpack.c.l.b16 %v220
    %v477 = vunpack.c.l.b16 %v221
    %v478 = vunpack.c.l.b16 %v222
    %v479 = vunpack.c.l.b16 %v223
    %v480 = vunpack.c.l.b16 %v224
    %v481 = vunpack.c.l.b16 %v225
    %v482 = vunpack.c.l.b16 %v226
    %v483 = vunpack.c.l.b16 %v227
    %v484 = vunpack.c.l.b16 %v228
    %v485 = vunpack.c.l.b16 %v229
    %v486 = vunpack.c.l.b16 %v230
    %v487 = vunpack.c.l.b16 %v231
    %v488 = vunpack.c.l.b16 %v232
    %v489 = vunpack.c.l.b16 %v233
    %v490 = vunpack.c.l.b16 %v234
    %v491 = vunpack.c.l.b16 %v235
    %v492 = vunpack.c.l.b16 %v236
    %v493 = vunpack.c.l.b16 %v237
    %v494 = vunpack.c.l.b16 %v238
    %v495 = vunpack.c.l.b16 %v239
    %v496 = vunpack.c.l.b16 %v240
    %v497 = vunpack.c.l.b16 %v241
    %v498 = vunpack.c.l.b16 %v242
    %v499 = vunpack.c.l.b16 %v243
    %v500 = vunpack.c.l.b16 %v244
    %v501 = vunpack.c.l.b16 %v245
    %v502 = vunpack.c.l.b16 %v246
    %v503 = vunpack.c.l.b16 %v247
    %v504 = vunpack.c.l.b16 %v248
    %v505 = vunpack.c.l.b16 %v249
    %v506 = vunpack.c.l.b16 %v250
    %v507 = vunpack.c.l.b16 %v251
    %v508 = vunpack.c.l.b16 %v252
    %v509 = vunpack.c.l.b16 %v253
    %v510 = vunpack.c.l.b16 %v254
    %v511 = vunpack.c.l.b16 %v255
    %v512 = vunpack.c.l.b16 %v256
    %v513 = vunpack.c.l.b16 %v257
    %v514 = vunpack.c.l.b16 %v258
    %v515 = vunpack.c.l.b16 %v259
    %v516 = vunpack.c.l.b16 %v260
    %v517 = vpack.c.b16 %v390, %v389
    %v518 = vpack.c.b16 %v392, %v391
    %v519 = vpack.c.b16 %v394, %v393
    %v520 = vpack.c.b16 %v396, %v395
    %v521 = vpack.c.b16 %v398, %v397
    %v522 = vpack.c.b16 %v400, %v399
    %v523 = vpack.c.b16 %v402, %v401
    %v524 = vpack.c.b16 %v404, %v403
    %v525 = vpack.c.b16 %v406, %v405
    %v526 = vpack.c.b16 %v408, %v407
    %v527 = vpack.c.b16 %v410, %v409
    %v528 = vpack.c.b16 %v412, %v411
    %v529 = vpack.c.b16 %v414, %v413
    %v530 = vpack.c.b16 %v416, %v415
    %v531 = vpack.c.b16 %v418, %v417
    %v532 = vpack.c.b16 %v420, %v419
    %v533 = vpack.c.b16 %v422, %v421
    %v534 = vpack.c.b16 %v424, %v423
    %v535 = vpack.c.b16 %v426, %v425
    %v536 = vpack.c.b16 %v428, %v427
    %v537 = vpack.c.b16 %v430, %v429
    %v538 = vpack.c.b16 %v432, %v431
    %v539 = vpack.c.b16 %v434, %v433
    %v540 = vpack.c.b16 %v436, %v435
    %v541 = vpack.c.b16 %v438, %v437
    %v542 = vpack.c.b16 %v440, %v439
    %v543 = vpack.c.b16 %v442, %v441
    %v544 = vpack.c.b16 %v444, %v443
    %v545 = vpack.c.b16 %v446, %v445
    %v546 = vpack.c.b16 %v448, %v447
    %v547 = vpack.c.b16 %v450, %v449
    %v548 = vpack.c.b16 %v452, %v451
    %v549 = vpack.c.b16 %v454, %v453
    %v550 = vpack.c.b16 %v456, %v455
    %v551 = vpack.c.b16 %v458, %v457
    %v552 = vpack.c.b16 %v460, %v459
    %v553 = vpack.c.b16 %v462, %v461
    %v554 = vpack.c.b16 %v464, %v463
    %v555 = vpack.c.b16 %v466, %v465
    %v556 = vpack.c.b16 %v468, %v467
    %v557 = vpack.c.b16 %v470, %v469
    %v558 = vpack.c.b16 %v472, %v471
    %v559 = vpack.c.b16 %v474, %v473
    %v560 = vpack.c.b16 %v476, %v475
    %v561 = vpack.c.b16 %v478, %v477
    %v562 = vpack.c.b16 %v480, %v479
    %v563 = vpack.c.b16 %v482, %v481
    %v564 = vpack.c.b16 %v484, %v483
    %v565 = vpack.c.b16 %v486, %v485
    %v566 = vpack.c.b16 %v488, %v487
    %v567 = vpack.c.b16 %v490, %v489
    %v568 = vpack.c.b16 %v492, %v491
    %v569 = vpack.c.b16 %v494, %v493
    %v570 = vpack.c.b16 %v496, %v495
    %v571 = vpack.c.b16 %v498, %v497
    %v572 = vpack.c.b16 %v500, %v499
    %v573 = vpack.c.b16 %v502, %v501
    %v574 = vpack.c.b16 %v504, %v503
    %v575 = vpack.c.b16 %v506, %v505
    %v576 = vpack.c.b16 %v508, %v507
    %v577 = vpack.c.b16 %v510, %v509
    %v578 = vpack.c.b16 %v512, %v511
    %v579 = vpack.c.b16 %v514, %v513
    %v580 = vpack.c.b16 %v516, %v515
    %645 = vmatprep.subr.bf16.mxu0 0
    %646 = vmatpush1.bf16.msra.mxu0 %v517
    %647 = vmatprep.subr.bf16.mxu0 0
    %648 = vmatpush1.bf16.msra.mxu0 %v518
    %649 = vmatprep.subr.bf16.mxu0 0
    %650 = vmatpush1.bf16.msra.mxu0 %v519
    %651 = vmatprep.subr.bf16.mxu0 0
    %652 = vmatpush1.bf16.msra.mxu0 %v520
    %653 = vmatprep.subr.bf16.mxu0 0
    %654 = vmatpush1.bf16.msra.mxu0 %v521
    %655 = vmatprep.subr.bf16.mxu0 0
    %656 = vmatpush1.bf16.msra.mxu0 %v522
    %657 = vmatprep.subr.bf16.mxu0 0
    %658 = vmatpush1.bf16.msra.mxu0 %v523
    %659 = vmatprep.subr.bf16.mxu0 0
    %660 = vmatpush1.bf16.msra.mxu0 %v524
    %661 = vmatprep.subr.bf16.mxu0 0
    %662 = vmatpush1.bf16.msra.mxu0 %v525
    %663 = vmatprep.subr.bf16.mxu0 0
    %664 = vmatpush1.bf16.msra.mxu0 %v526
    %665 = vmatprep.subr.bf16.mxu0 0
    %666 = vmatpush1.bf16.msra.mxu0 %v527
    %667 = vmatprep.subr.bf16.mxu0 0
    %668 = vmatpush1.bf16.msra.mxu0 %v528
    %669 = vmatprep.subr.bf16.mxu0 0
    %670 = vmatpush1.bf16.msra.mxu0 %v529
    %671 = vmatprep.subr.bf16.mxu0 0
    %672 = vmatpush1.bf16.msra.mxu0 %v530
    %673 = vmatprep.subr.bf16.mxu0 0
    %674 = vmatpush1.bf16.msra.mxu0 %v531
    %675 = vmatprep.subr.bf16.mxu0 0
    %676 = vmatpush1.bf16.msra.mxu0 %v532
    %677 = vmatprep.mubr.bf16.mxu0 %v126
    %678 = vmatmul.mubr.bf16.gmra.mrb[0].mxu0 %v125
    %v679 = vpop.f32.mrb[0].mxu0
    %v680 = vadd.f32 0.0, %v679
    %v681 = vpop.f32.mrb[0].mxu0
    %v682 = vpop.f32.mrb[0].mxu0
    %v683 = vpop.f32.mrb[0].mxu0
    %684 = vdwg.mxu0
    %685 = vmatprep.subr.bf16.mxu0 0
    %686 = vmatpush1.bf16.msra.mxu0 %v533
    %687 = vmatprep.subr.bf16.mxu0 0
    %688 = vmatpush1.bf16.msra.mxu0 %v534
    %689 = vmatprep.subr.bf16.mxu0 0
    %690 = vmatpush1.bf16.msra.mxu0 %v535
    %691 = vmatprep.subr.bf16.mxu0 0
    %692 = vmatpush1.bf16.msra.mxu0 %v536
    %693 = vmatprep.subr.bf16.mxu0 0
    %694 = vmatpush1.bf16.msra.mxu0 %v537
    %695 = vmatprep.subr.bf16.mxu0 0
    %696 = vmatpush1.bf16.msra.mxu0 %v538
    %697 = vmatprep.subr.bf16.mxu0 0
    %698 = vmatpush1.bf16.msra.mxu0 %v539
    %699 = vmatprep.subr.bf16.mxu0 0
    %700 = vmatpush1.bf16.msra.mxu0 %v540
    %701 = vmatprep.subr.bf16.mxu0 0
    %702 = vmatpush1.bf16.msra.mxu0 %v541
    %703 = vmatprep.subr.bf16.mxu0 0
    %704 = vmatpush1.bf16.msra.mxu0 %v542
    %705 = vmatprep.subr.bf16.mxu0 0
    %706 = vmatpush1.bf16.msra.mxu0 %v543
    %707 = vmatprep.subr.bf16.mxu0 0
    %708 = vmatpush1.bf16.msra.mxu0 %v544
    %709 = vmatprep.subr.bf16.mxu0 0
    %710 = vmatpush1.bf16.msra.mxu0 %v545
    %711 = vmatprep.subr.bf16.mxu0 0
    %712 = vmatpush1.bf16.msra.mxu0 %v546
    %713 = vmatprep.subr.bf16.mxu0 0
    %714 = vmatpush1.bf16.msra.mxu0 %v547
    %715 = vmatprep.subr.bf16.mxu0 0
    %716 = vmatpush1.bf16.msra.mxu0 %v548
    %717 = vmatprep.mubr.bf16.mxu0 %v128
    %718 = vmatmul.mubr.bf16.gmra.mrb[0].mxu0 %v127
    %v719 = vpop.f32.mrb[0].mxu0
    %v720 = vadd.f32 %v680, %v719
    %v721 = vpop.f32.mrb[0].mxu0
    %v722 = vpop.f32.mrb[0].mxu0
    %v723 = vpop.f32.mrb[0].mxu0
    %724 = vdwg.mxu0
    %725 = vmatprep.subr.bf16.mxu0 0
    %726 = vmatpush1.bf16.msra.mxu0 %v549
    %727 = vmatprep.subr.bf16.mxu0 0
    %728 = vmatpush1.bf16.msra.mxu0 %v550
    %729 = vmatprep.subr.bf16.mxu0 0
    %730 = vmatpush1.bf16.msra.mxu0 %v551
    %731 = vmatprep.subr.bf16.mxu0 0
    %732 = vmatpush1.bf16.msra.mxu0 %v552
    %733 = vmatprep.subr.bf16.mxu0 0
    %734 = vmatpush1.bf16.msra.mxu0 %v553
    %735 = vmatprep.subr.bf16.mxu0 0
    %736 = vmatpush1.bf16.msra.mxu0 %v554
    %737 = vmatprep.subr.bf16.mxu0 0
    %738 = vmatpush1.bf16.msra.mxu0 %v555
    %739 = vmatprep.subr.bf16.mxu0 0
    %740 = vmatpush1.bf16.msra.mxu0 %v556
    %741 = vmatprep.subr.bf16.mxu0 0
    %742 = vmatpush1.bf16.msra.mxu0 %v557
    %743 = vmatprep.subr.bf16.mxu0 0
    %744 = vmatpush1.bf16.msra.mxu0 %v558
    %745 = vmatprep.subr.bf16.mxu0 0
    %746 = vmatpush1.bf16.msra.mxu0 %v559
    %747 = vmatprep.subr.bf16.mxu0 0
    %748 = vmatpush1.bf16.msra.mxu0 %v560
    %749 = vmatprep.subr.bf16.mxu0 0
    %750 = vmatpush1.bf16.msra.mxu0 %v561
    %751 = vmatprep.subr.bf16.mxu0 0
    %752 = vmatpush1.bf16.msra.mxu0 %v562
    %753 = vmatprep.subr.bf16.mxu0 0
    %754 = vmatpush1.bf16.msra.mxu0 %v563
    %755 = vmatprep.subr.bf16.mxu0 0
    %756 = vmatpush1.bf16.msra.mxu0 %v564
    %757 = vmatprep.mubr.bf16.mxu0 %v130
    %758 = vmatmul.mubr.bf16.gmra.mrb[0].mxu0 %v129
    %v759 = vpop.f32.mrb[0].mxu0
    %v760 = vadd.f32 %v720, %v759
    %v761 = vpop.f32.mrb[0].mxu0
    %v762 = vpop.f32.mrb[0].mxu0
    %v763 = vpop.f32.mrb[0].mxu0
    %764 = vdwg.mxu0
    %765 = vmatprep.subr.bf16.mxu0 0
    %766 = vmatpush1.bf16.msra.mxu0 %v565
    %767 = vmatprep.subr.bf16.mxu0 0
    %768 = vmatpush1.bf16.msra.mxu0 %v566
    %769 = vmatprep.subr.bf16.mxu0 0
    %770 = vmatpush1.bf16.msra.mxu0 %v567
    %771 = vmatprep.subr.bf16.mxu0 0
    %772 = vmatpush1.bf16.msra.mxu0 %v568
    %773 = vmatprep.subr.bf16.mxu0 0
    %774 = vmatpush1.bf16.msra.mxu0 %v569
    %775 = vmatprep.subr.bf16.mxu0 0
    %776 = vmatpush1.bf16.msra.mxu0 %v570
    %777 = vmatprep.subr.bf16.mxu0 0
    %778 = vmatpush1.bf16.msra.mxu0 %v571
    %779 = vmatprep.subr.bf16.mxu0 0
    %780 = vmatpush1.bf16.msra.mxu0 %v572
    %781 = vmatprep.subr.bf16.mxu0 0
    %782 = vmatpush1.bf16.msra.mxu0 %v573
    %783 = vmatprep.subr.bf16.mxu0 0
    %784 = vmatpush1.bf16.msra.mxu0 %v574
    %785 = vmatprep.subr.bf16.mxu0 0
    %786 = vmatpush1.bf16.msra.mxu0 %v575
    %787 = vmatprep.subr.bf16.mxu0 0
    %788 = vmatpush1.bf16.msra.mxu0 %v576
    %789 = vmatprep.subr.bf16.mxu0 0
    %790 = vmatpush1.bf16.msra.mxu0 %v577
    %791 = vmatprep.subr.bf16.mxu0 0
    %792 = vmatpush1.bf16.msra.mxu0 %v578
    %793 = vmatprep.subr.bf16.mxu0 0
    %794 = vmatpush1.bf16.msra.mxu0 %v579
    %795 = vmatprep.subr.bf16.mxu0 0
    %796 = vmatpush1.bf16.msra.mxu0 %v580
    %797 = vmatprep.mubr.bf16.mxu0 %v132
    %798 = vmatmul.mubr.bf16.gmra.mrb[0].mxu0 %v131
    %v799 = vpop.f32.mrb[0].mxu0
    %v800 = vadd.f32 %v760, %v799
    %v801 = vpop.f32.mrb[0].mxu0
    %v802 = vpop.f32.mrb[0].mxu0
    %v803 = vpop.f32.mrb[0].mxu0
    %804 = vdwg.mxu0
    %v805 = vadd.f32 %v28, %v800
    %vm806 = vcmask 261120
    %807 = vst.msk [vmem:[#allocation2] sm:$0xff] %vm806, %v805
    // Predicated region
    $region26: #{tpu_custom_call.1} parent=1 // pred_check
      %p808 = pneg %p22
    $region27: #{tpu_custom_call.1} parent=1 // pred_check_branch
      %810 = sbr.rel (%p808) target = $region29
    $region28: #{tpu_custom_call.1} parent=1 // pred_region
      %v811 = vld [vmem:[#allocation2] sm:$0xff]
      %v812 = vld [vmem:[%s2] sm:$0x1]
      %v814 = vlaneseq
      %v815 = vshrl.u32 %v814, 7
      %v816 = vsub.s32 0, %v815
      %v817 = vrot.slane %v812, %v816
      %v819 = vadd.f32 %v811, %v817
      %v820 = vmax.f32 %v819, 0.0
      %v821 = vpack.c.bf16 %v820, %v820
      %v822 = vld [vmem:[%s3] sm:$0xf]
      %v823 = vld [vmem:[%s3 + $0x4] sm:$0xf]
      %v824 = vld [vmem:[%s3 + $0x8] sm:$0xf]
      %v825 = vld [vmem:[%s3 + $0xc] sm:$0xf]
      %v826 = vld [vmem:[%s4] sm:$0x1]
      %v828 = vlaneseq
      %v829 = vshrl.u32 %v828, 7
      %v830 = vsub.s32 0, %v829
      %v831 = vrot.slane %v826, %v830
      %v837 = vunpack.c.l.b16 %v822
      %v838 = vunpack.c.l.b16 %v823
      %v839 = vunpack.c.l.b16 %v824
      %v840 = vunpack.c.l.b16 %v825
      %v841 = vpack.c.b16 %v838, %v837
      %v842 = vpack.c.b16 %v840, %v839
      %v846 = vsel %vm806, %v821, 0
      %848 = vmatprep.subr.bf16.mxu0 0
      %849 = vmatpush1.bf16.msra.mxu0 %v841
      %850 = vmatprep.subr.bf16.mxu0 0
      %851 = vmatpush1.bf16.msra.mxu0 %v842
      %852 = vmatprep.subr.bf16.mxu0 0
      %853 = vmatpush1.bf16.msra.mxu0 0
      %854 = vmatprep.subr.bf16.mxu0 0
      %855 = vmatpush1.bf16.msra.mxu0 0
      %856 = vmatprep.subr.bf16.mxu0 0
      %857 = vmatpush1.bf16.msra.mxu0 0
      %858 = vmatprep.subr.bf16.mxu0 0
      %859 = vmatpush1.bf16.msra.mxu0 0
      %860 = vmatprep.subr.bf16.mxu0 0
      %861 = vmatpush1.bf16.msra.mxu0 0
      %862 = vmatprep.subr.bf16.mxu0 0
      %863 = vmatpush1.bf16.msra.mxu0 0
      %864 = vmatprep.subr.bf16.mxu0 0
      %865 = vmatpush1.bf16.msra.mxu0 0
      %866 = vmatprep.subr.bf16.mxu0 0
      %867 = vmatpush1.bf16.msra.mxu0 0
      %868 = vmatprep.subr.bf16.mxu0 0
      %869 = vmatpush1.bf16.msra.mxu0 0
      %870 = vmatprep.subr.bf16.mxu0 0
      %871 = vmatpush1.bf16.msra.mxu0 0
      %872 = vmatprep.subr.bf16.mxu0 0
      %873 = vmatpush1.bf16.msra.mxu0 0
      %874 = vmatprep.subr.bf16.mxu0 0
      %875 = vmatpush1.bf16.msra.mxu0 0
      %876 = vmatprep.subr.bf16.mxu0 0
      %877 = vmatpush1.bf16.msra.mxu0 0
      %878 = vmatprep.subr.bf16.mxu0 0
      %879 = vmatpush1.bf16.msra.mxu0 0
      %880 = vmatprep.mubr.bf16.mxu0 0
      %881 = vmatmul.mubr.bf16.gmra.mrb[0].mxu0 %v846
      %v882 = vpop.f32.mrb[0].mxu0
      %v883 = vadd.f32 %v831, %v882
      %v884 = vpop.f32.mrb[0].mxu0
      %v885 = vpop.f32.mrb[0].mxu0
      %v886 = vpop.f32.mrb[0].mxu0
      %887 = vdwg.mxu0
      %888 = vst [vmem:[#allocation3] sm:$0xff] %v883
    $region29: #{tpu_custom_call.1} parent=1 // pred_fallthru
      _
    // Predicated region
    $region30: #{tpu_custom_call.1} parent=1 // pred_check
      _
    $region31: #{tpu_custom_call.1} parent=1 // pred_check_branch
      %890 = sbr.rel (0) target = $region33
    $region32: #{tpu_custom_call.1} parent=1 // pred_region
      %s892 = ssub.s32 128, 32
      %893 = vsyncadd [#allocation4], %s892
      %s894 = sshll.u32 [#allocation3], 4
      %s895 = int_to_ptr.vmem [resolvable:$true] %s894
      %900 = dma.vmem_to_hbm [thread:$0]  %s895, 32, %s5, [#allocation4], 32, 32, 2
    $region33: #{tpu_custom_call.1} parent=1 // pred_fallthru
      _
    // Predicated region
    $region34: #{tpu_custom_call.1} parent=1 // pred_check
      _
    $region35: #{tpu_custom_call.1} parent=1 // pred_check_branch
      %902 = sbr.rel (0) target = $region37
    $region36: #{tpu_custom_call.1} parent=1 // pred_region
      %903 = dma.done [#allocation4], 128
    $region37: #{tpu_custom_call.1} parent=1 // pred_fallthru
      _
    %904 = vsyncpa [#allocation4], 1

</llo_original>
